<compile_context>
chip_gen: v7x
topology: tpu7x:2x2x1
jax: 0.10.0
libtpu: 0.0.40
codegen_flags: <defaults>
</compile_context>

<pallas_src>
from functools import partial

import jax
import jax.numpy as jnp
from jax.experimental import pallas as pl
from jax.experimental.pallas import tpu as pltpu

PATCH = 16     # taskonomy encoders downsample spatial dims by 16x
REP_CH = 8     # each visualpriors representation yields 8 feature channels
TILE_M = 1024  # patches per grid step (bf16: 2 x 1.5 MiB buffers in VMEM)


def _patch_embed_kernel(xT_ref, wT_ref, b_ref, o_ref):
    # (Cout, K)bf16 @ (K, TILE_M)bf16 -> f32 accumulate, f32 bias add.
    acc = jnp.dot(wT_ref[...], xT_ref[...], preferred_element_type=jnp.float32)
    o_ref[...] = (acc + b_ref[...]).astype(o_ref.dtype)


def _patch_embed_matmul(patches_T, wT, b):
    """patches_T: (K, M) bf16, wT: (Cout, K) bf16, b: (Cout, 1) f32 -> (Cout, M) f32."""
    K, M = patches_T.shape
    Cout = wT.shape[0]
    tile_m = min(TILE_M, M)
    grid = (pl.cdiv(M, tile_m),)

    return pl.pallas_call(
        _patch_embed_kernel,
        out_shape=jax.ShapeDtypeStruct((Cout, M), jnp.float32),
        grid=grid,
        in_specs=[
            # activation stream: tiled along M, double-buffered by the pipeline
            pl.BlockSpec((K, tile_m), lambda i: (0, i)),
            # weights / bias: constant block index -> resident in VMEM
            pl.BlockSpec((Cout, K), lambda i: (0, 0)),
            pl.BlockSpec((Cout, 1), lambda i: (0, 0)),
        ],
        # lane-dense output: minor dim is tile_m (multiple of 128 for real M)
        out_specs=pl.BlockSpec((Cout, tile_m), lambda i: (0, i)),
        compiler_params=pltpu.CompilerParams(
            dimension_semantics=("parallel",)),
        cost_estimate=pl.CostEstimate(
            flops=2 * M * K * Cout,
            transcendentals=0,
            bytes_accessed=K * M * 2 + Cout * K * 2 + Cout * 4 + Cout * M * 4,
        ),
    )(patches_T, wT, b)


@partial(jax.jit, static_argnames=("size",))
def _midrep_forward(x, wT, b, *, size):
    N, C, H, W = x.shape
    assert H % PATCH == 0 and W % PATCH == 0
    Hp, Wp = H // PATCH, W // PATCH
    K = C * PATCH * PATCH
    M = N * Hp * Wp
    Cout = wT.shape[0]

    # Single fused XLA pass: f32 NCHW -> bf16 transposed patches (K, M),
    # K ordered (c, ph, pw), M ordered (n, hp, wp).
    x6 = x.astype(jnp.bfloat16).reshape(N, C, Hp, PATCH, Wp, PATCH)
    patches_T = x6.transpose(1, 3, 5, 0, 2, 4).reshape(K, M)

    # Hot path on the MXU: all reps at once.
    feat_T = _patch_embed_matmul(patches_T, wT, b)          # (Cout, M) f32

    # (Cout, N, Hp, Wp) -> (N, Cout, Hp, Wp): tiny, output-sized transpose
    # (matches visualpriors' torch.cat([...], dim=1) NCHW layout).
    feat_nchw = feat_T.reshape(Cout, N, Hp, Wp).transpose(1, 0, 2, 3)

    # PyTorch: x.view(x.shape[0], self.size, -1) on contiguous NCHW features.
    return feat_nchw.reshape(N, size, -1)


def _reference_forward(x, wT, b, size):
    """Pure-jnp reference (same bf16-rounded inputs, f32 math)."""
    N, C, H, W = x.shape
    Hp, Wp = H // PATCH, W // PATCH
    K = C * PATCH * PATCH
    x6 = x.astype(jnp.bfloat16).astype(jnp.float32).reshape(
        N, C, Hp, PATCH, Wp, PATCH)
    xT = x6.transpose(1, 3, 5, 0, 2, 4).reshape(K, N * Hp * Wp)
    feat_T = jnp.dot(wT.astype(jnp.float32), xT) + b
    Cout = wT.shape[0]
    feat_nchw = feat_T.reshape(Cout, N, Hp, Wp).transpose(1, 0, 2, 3)
    return feat_nchw.reshape(N, size, -1)


class MidRepEncoder:
    def __init__(self, midreps_size, in_channels=3):
        if midreps_size == 2:
            self.reps = ["segment_unsup2d", "segment_unsup25d"]
            self.size = 2
        elif midreps_size == 3:
            # NOTE: mirrors the PyTorch module exactly: 2 reps but view(N,3,-1);
            # like the original, this requires 16*Hp*Wp to be divisible by 3.
            self.reps = ["segment_unsup2d", "segment_unsup25d"]
            self.size = 3
        elif midreps_size == 1:
            self.reps = ["autoencoding"]
            self.size = 1
        else:
            raise ValueError("unsupported midreps_size")

        n_reps = len(self.reps)
        K = in_channels * PATCH * PATCH
        Cout = n_reps * REP_CH

        # Deterministic synthetic parameters (no checkpoint load).
        kw, kb = jax.random.split(jax.random.PRNGKey(0))
        scale = 1.0 / float(K) ** 0.5
        # Transposed weight (Cout, K), bf16 for the MXU/DMA stream.
        self.wT = jax.random.uniform(
            kw, (Cout, K), jnp.float32, -scale, scale).astype(jnp.bfloat16)
        # Bias kept in f32, added in the f32 accumulator.
        self.b = jax.random.uniform(kb, (Cout, 1), jnp.float32, -scale, scale)

    def __call__(self, x):
        return _midrep_forward(x, self.wT, self.b, size=self.size)


if __name__ == "__main__":
    enc = MidRepEncoder(midreps_size=2)

    # Small deterministic NCHW RGB input (H, W multiples of 16).
    key = jax.random.PRNGKey(0)
    x = jax.random.normal(key, (2, 3, 128, 128), dtype=jnp.float32)

    out = jax.block_until_ready(enc(x))

    N, C, H, W = x.shape
    Hp, Wp = H // PATCH, W // PATCH
    Cout = len(enc.reps) * REP_CH
    # Expected: (N, size, Cout*Hp*Wp / size) = (2, 2, 512)
    assert out.shape == (N, enc.size, Cout * Hp * Wp // enc.size), out.shape
    assert out.dtype == jnp.float32

    ref = _reference_forward(x, enc.wT, enc.b, enc.size)
    max_err = float(jnp.max(jnp.abs(out - ref)))
    assert max_err < 1e-2, f"max_err={max_err}"

    print("KERNEL_OK")
</pallas_src>

<mosaic_0001>
module attributes {stable_mosaic.version = 11 : i64} {
  func.func @_patch_embed_kernel(%arg0: i32, %arg1: memref<768x128xbf16, #tpu.memory_space<vmem>>, %arg2: memref<16x768xbf16, #tpu.memory_space<vmem>>, %arg3: memref<16x1xf32, #tpu.memory_space<vmem>>, %arg4: memref<16x128xf32, #tpu.memory_space<vmem>>) attributes {dimension_semantics = [#tpu.dimension_semantics<parallel>], iteration_bounds = array<i64: 1>, scalar_prefetch = 0 : i64, scratch_operands = 0 : i64, tpu.core_type = #tpu.core_type<tc>, window_params = [{transform_indices = @transform_0, window_bounds = array<i64: 768, 128>}, {pipeline_mode = #tpu.pipeline_mode<synchronous>, transform_indices = @transform_1, window_bounds = array<i64: 16, 768>}, {pipeline_mode = #tpu.pipeline_mode<synchronous>, transform_indices = @transform_2, window_bounds = array<i64: 16, 1>}, {transform_indices = @transform_3, window_bounds = array<i64: 16, 128>}]} {
    %c0 = arith.constant 0 : index
    %c0_0 = arith.constant 0 : index
    %0 = vector.load %arg2[%c0, %c0_0] : memref<16x768xbf16, #tpu.memory_space<vmem>>, vector<16x768xbf16>
    %c0_1 = arith.constant 0 : index
    %c0_2 = arith.constant 0 : index
    %1 = vector.load %arg1[%c0_1, %c0_2] : memref<768x128xbf16, #tpu.memory_space<vmem>>, vector<768x128xbf16>
    %cst = arith.constant dense<0.000000e+00> : vector<16x128xf32>
    %2 = tpu.matmul %0, %1, %cst {dimension_numbers = #tpu.dot_dimension_numbers<[1], [0], [0], [1], [0, 0, 1, 1], [], []>} : vector<16x768xbf16>, vector<768x128xbf16>, vector<16x128xf32> -> vector<16x128xf32>
    %c0_3 = arith.constant 0 : index
    %c0_4 = arith.constant 0 : index
    %3 = vector.load %arg3[%c0_3, %c0_4] : memref<16x1xf32, #tpu.memory_space<vmem>>, vector<16x1xf32>
    %4 = vector.broadcast %3 : vector<16x1xf32> to vector<16x128xf32>
    %5 = arith.addf %2, %4 : vector<16x128xf32>
    %c0_5 = arith.constant 0 : index
    %c0_6 = arith.constant 0 : index
    %6 = vector.load %arg4[%c0_5, %c0_6] : memref<16x128xf32, #tpu.memory_space<vmem>>, vector<16x128xf32>
    tpu.vector_store %arg4[%c0_5, %c0_6], %5 {strides = array<i32>} : memref<16x128xf32, #tpu.memory_space<vmem>>, vector<16x128xf32>,
    return
  }
  func.func @transform_0(%arg0: i32) -> (i32, i32) {
    %c0_i32 = arith.constant 0 : i32
    %c0_i32_0 = arith.constant 0 : i32
    return %c0_i32, %arg0 : i32, i32
  }
  func.func @transform_1(%arg0: i32) -> (i32, i32) {
    %c0_i32 = arith.constant 0 : i32
    %c0_i32_0 = arith.constant 0 : i32
    %c0_i32_1 = arith.constant 0 : i32
    return %c0_i32, %c0_i32_0 : i32, i32
  }
  func.func @transform_2(%arg0: i32) -> (i32, i32) {
    %c0_i32 = arith.constant 0 : i32
    %c0_i32_0 = arith.constant 0 : i32
    %c0_i32_1 = arith.constant 0 : i32
    return %c0_i32, %c0_i32_0 : i32, i32
  }
  func.func @transform_3(%arg0: i32) -> (i32, i32) {
    %c0_i32 = arith.constant 0 : i32
    %c0_i32_0 = arith.constant 0 : i32
    return %c0_i32, %arg0 : i32, i32
  }
}

</mosaic_0001>

<llo_original>
// kernel: _midrep_forward.1
$region0: #{_midrep_forward.1}
  #allocation0 [shape = 'u32[]', space=smem, size = 0x4, offset = 0x4, fixed_abs, tag = 'smem constant byte address 0x4 - core index']
  #allocation1 [shape = 'u32[144,128]{1,0:T(1,128)}', space=vmem, size = 0x12000, scoped, tag = 'internal scratch']
  %s0 = inlined_call_operand.vmem [shape: bf16[768,128], index: 0, kind: input, shape index: {}]
  %s1 = inlined_call_operand.vmem [shape: bf16[16,768], index: 1, kind: input, shape index: {}]
  %s2 = inlined_call_operand.vmem [shape: f32[16,1], index: 2, kind: input, shape index: {}]
  %s3 = inlined_call_operand.vmem [shape: f32[16,128], index: 3, kind: output, shape index: {}]
  %s4 = sld [smem:[#allocation0]]
  $region22: #{_midrep_forward.1} parent=0
    _
  %s6 = ssub.s32 1, %s4
  %s7 = scalar_select 0, %s6, %s4
  // Predicated region
  $region2: #{_midrep_forward.1} parent=0 // pred_check
    _
  $region3: #{_midrep_forward.1} parent=0 // pred_check_branch
    %9 = sbr.rel (0) target = $region5
  $region4: #{_midrep_forward.1} parent=0 // pred_region
    _
  $region5: #{_midrep_forward.1} parent=0 // pred_fallthru
    _
  // Predicated region
  $region6: #{_midrep_forward.1} parent=0 // pred_check
    _
  $region7: #{_midrep_forward.1} parent=0 // pred_check_branch
    %11 = sbr.rel (0) target = $region9
  $region8: #{_midrep_forward.1} parent=0 // pred_region
    _
  $region9: #{_midrep_forward.1} parent=0 // pred_fallthru
    _
  // Predicated region
  $region10: #{_midrep_forward.1} parent=0 // pred_check
    _
  $region11: #{_midrep_forward.1} parent=0 // pred_check_branch
    %13 = sbr.rel (0) target = $region13
  $region12: #{_midrep_forward.1} parent=0 // pred_region
    _
  $region13: #{_midrep_forward.1} parent=0 // pred_fallthru
    _
  %v15 = vld [vmem:[%s1] sm:$0xff]
  %v16 = vld [vmem:[%s1 + $0x8] sm:$0xff]
  %v17 = vld [vmem:[%s1 + $0x10] sm:$0xff]
  %v18 = vld [vmem:[%s1 + $0x18] sm:$0xff]
  %v19 = vld [vmem:[%s1 + $0x20] sm:$0xff]
  %v20 = vld [vmem:[%s1 + $0x28] sm:$0xff]
  %v21 = vld [vmem:[%s0] sm:$0xf]
  %v22 = vld [vmem:[%s0 + $0x4] sm:$0xf]
  %v23 = vld [vmem:[%s0 + $0x8] sm:$0xf]
  %v24 = vld [vmem:[%s0 + $0xc] sm:$0xf]
  %v25 = vld [vmem:[%s0 + $0x10] sm:$0xf]
  %v26 = vld [vmem:[%s0 + $0x14] sm:$0xf]
  %v27 = vld [vmem:[%s0 + $0x18] sm:$0xf]
  %v28 = vld [vmem:[%s0 + $0x1c] sm:$0xf]
  %v29 = vld [vmem:[%s0 + $0x20] sm:$0xf]
  %v30 = vld [vmem:[%s0 + $0x24] sm:$0xf]
  %v31 = vld [vmem:[%s0 + $0x28] sm:$0xf]
  %v32 = vld [vmem:[%s0 + $0x2c] sm:$0xf]
  %v33 = vld [vmem:[%s0 + $0x30] sm:$0xf]
  %v34 = vld [vmem:[%s0 + $0x34] sm:$0xf]
  %v35 = vld [vmem:[%s0 + $0x38] sm:$0xf]
  %v36 = vld [vmem:[%s0 + $0x3c] sm:$0xf]
  %v37 = vld [vmem:[%s0 + $0x40] sm:$0xf]
  %v38 = vld [vmem:[%s0 + $0x44] sm:$0xf]
  %v39 = vld [vmem:[%s0 + $0x48] sm:$0xf]
  %v40 = vld [vmem:[%s0 + $0x4c] sm:$0xf]
  %v41 = vld [vmem:[%s0 + $0x50] sm:$0xf]
  %v42 = vld [vmem:[%s0 + $0x54] sm:$0xf]
  %v43 = vld [vmem:[%s0 + $0x58] sm:$0xf]
  %v44 = vld [vmem:[%s0 + $0x5c] sm:$0xf]
  %v45 = vld [vmem:[%s0 + $0x60] sm:$0xf]
  %v46 = vld [vmem:[%s0 + $0x64] sm:$0xf]
  %v47 = vld [vmem:[%s0 + $0x68] sm:$0xf]
  %v48 = vld [vmem:[%s0 + $0x6c] sm:$0xf]
  %v49 = vld [vmem:[%s0 + $0x70] sm:$0xf]
  %v50 = vld [vmem:[%s0 + $0x74] sm:$0xf]
  %v51 = vld [vmem:[%s0 + $0x78] sm:$0xf]
  %v52 = vld [vmem:[%s0 + $0x7c] sm:$0xf]
  %v53 = vld [vmem:[%s0 + $0x80] sm:$0xf]
  %v54 = vld [vmem:[%s0 + $0x84] sm:$0xf]
  %v55 = vld [vmem:[%s0 + $0x88] sm:$0xf]
  %v56 = vld [vmem:[%s0 + $0x8c] sm:$0xf]
  %v57 = vld [vmem:[%s0 + $0x90] sm:$0xf]
  %v58 = vld [vmem:[%s0 + $0x94] sm:$0xf]
  %v59 = vld [vmem:[%s0 + $0x98] sm:$0xf]
  %v60 = vld [vmem:[%s0 + $0x9c] sm:$0xf]
  %v61 = vld [vmem:[%s0 + $0xa0] sm:$0xf]
  %v62 = vld [vmem:[%s0 + $0xa4] sm:$0xf]
  %v63 = vld [vmem:[%s0 + $0xa8] sm:$0xf]
  %v64 = vld [vmem:[%s0 + $0xac] sm:$0xf]
  %v65 = vld [vmem:[%s0 + $0xb0] sm:$0xf]
  %v66 = vld [vmem:[%s0 + $0xb4] sm:$0xf]
  %v67 = vld [vmem:[%s0 + $0xb8] sm:$0xf]
  %v68 = vld [vmem:[%s0 + $0xbc] sm:$0xf]
  %v69 = vld [vmem:[%s0 + $0xc0] sm:$0xf]
  %v70 = vld [vmem:[%s0 + $0xc4] sm:$0xf]
  %v71 = vld [vmem:[%s0 + $0xc8] sm:$0xf]
  %v72 = vld [vmem:[%s0 + $0xcc] sm:$0xf]
  %v73 = vld [vmem:[%s0 + $0xd0] sm:$0xf]
  %v74 = vld [vmem:[%s0 + $0xd4] sm:$0xf]
  %v75 = vld [vmem:[%s0 + $0xd8] sm:$0xf]
  %v76 = vld [vmem:[%s0 + $0xdc] sm:$0xf]
  %v77 = vld [vmem:[%s0 + $0xe0] sm:$0xf]
  %v78 = vld [vmem:[%s0 + $0xe4] sm:$0xf]
  %v79 = vld [vmem:[%s0 + $0xe8] sm:$0xf]
  %v80 = vld [vmem:[%s0 + $0xec] sm:$0xf]
  %v81 = vld [vmem:[%s0 + $0xf0] sm:$0xf]
  %v82 = vld [vmem:[%s0 + $0xf4] sm:$0xf]
  %v83 = vld [vmem:[%s0 + $0xf8] sm:$0xf]
  %v84 = vld [vmem:[%s0 + $0xfc] sm:$0xf]
  %v85 = vld [vmem:[%s0 + $0x100] sm:$0xf]
  %v86 = vld [vmem:[%s0 + $0x104] sm:$0xf]
  %v87 = vld [vmem:[%s0 + $0x108] sm:$0xf]
  %v88 = vld [vmem:[%s0 + $0x10c] sm:$0xf]
  %v89 = vld [vmem:[%s0 + $0x110] sm:$0xf]
  %v90 = vld [vmem:[%s0 + $0x114] sm:$0xf]
  %v91 = vld [vmem:[%s0 + $0x118] sm:$0xf]
  %v92 = vld [vmem:[%s0 + $0x11c] sm:$0xf]
  %v93 = vld [vmem:[%s0 + $0x120] sm:$0xf]
  %v94 = vld [vmem:[%s0 + $0x124] sm:$0xf]
  %v95 = vld [vmem:[%s0 + $0x128] sm:$0xf]
  %v96 = vld [vmem:[%s0 + $0x12c] sm:$0xf]
  %v97 = vld [vmem:[%s0 + $0x130] sm:$0xf]
  %v98 = vld [vmem:[%s0 + $0x134] sm:$0xf]
  %v99 = vld [vmem:[%s0 + $0x138] sm:$0xf]
  %v100 = vld [vmem:[%s0 + $0x13c] sm:$0xf]
  %v101 = vld [vmem:[%s0 + $0x140] sm:$0xf]
  %v102 = vld [vmem:[%s0 + $0x144] sm:$0xf]
  %v103 = vld [vmem:[%s0 + $0x148] sm:$0xf]
  %v104 = vld [vmem:[%s0 + $0x14c] sm:$0xf]
  %v105 = vld [vmem:[%s0 + $0x150] sm:$0xf]
  %v106 = vld [vmem:[%s0 + $0x154] sm:$0xf]
  %v107 = vld [vmem:[%s0 + $0x158] sm:$0xf]
  %v108 = vld [vmem:[%s0 + $0x15c] sm:$0xf]
  %v109 = vld [vmem:[%s0 + $0x160] sm:$0xf]
  %v110 = vld [vmem:[%s0 + $0x164] sm:$0xf]
  %v111 = vld [vmem:[%s0 + $0x168] sm:$0xf]
  %v112 = vld [vmem:[%s0 + $0x16c] sm:$0xf]
  %v113 = vld [vmem:[%s0 + $0x170] sm:$0xf]
  %v114 = vld [vmem:[%s0 + $0x174] sm:$0xf]
  %v115 = vld [vmem:[%s0 + $0x178] sm:$0xf]
  %v116 = vld [vmem:[%s0 + $0x17c] sm:$0xf]
  %v117 = vld [vmem:[%s2] sm:$0xff]
  %v118 = vld [vmem:[%s2 + $0x8] sm:$0xff]
  %120 = vset.pattern.permute.xlu0 0
  %121 = vperm.xlu0 %120, %v117
  %v122 = vpop.permute.xlu0 %121
  %125 = vset.pattern.permute.xlu0 0
  %126 = vperm.xlu0 %125, %v118
  %v127 = vpop.permute.xlu0 %126
  %v135 = vunpack.c.l.b16 %v15
  %v136 = vunpack.c.h.b16 %v15
  %v137 = vunpack.c.l.b16 %v16
  %v138 = vunpack.c.h.b16 %v16
  %v139 = vunpack.c.l.b16 %v17
  %v140 = vunpack.c.h.b16 %v17
  %v141 = vunpack.c.l.b16 %v18
  %v142 = vunpack.c.h.b16 %v18
  %v143 = vunpack.c.l.b16 %v19
  %v144 = vunpack.c.h.b16 %v19
  %v145 = vunpack.c.l.b16 %v20
  %v146 = vunpack.c.h.b16 %v20
  %v147 = vpack.c.b16 %v141, %v135
  %v148 = vpack.c.b16 %v142, %v136
  %v149 = vpack.c.b16 %v143, %v137
  %v150 = vpack.c.b16 %v144, %v138
  %v151 = vpack.c.b16 %v145, %v139
  %v152 = vpack.c.b16 %v146, %v140
  %v255 = vunpack.c.l.b16 %v21
  %v256 = vunpack.c.l.b16 %v22
  %v257 = vunpack.c.l.b16 %v23
  %v258 = vunpack.c.l.b16 %v24
  %v259 = vunpack.c.l.b16 %v25
  %v260 = vunpack.c.l.b16 %v26
  %v261 = vunpack.c.l.b16 %v27
  %v262 = vunpack.c.l.b16 %v28
  %v263 = vunpack.c.l.b16 %v29
  %v264 = vunpack.c.l.b16 %v30
  %v265 = vunpack.c.l.b16 %v31
  %v266 = vunpack.c.l.b16 %v32
  %v267 = vunpack.c.l.b16 %v33
  %v268 = vunpack.c.l.b16 %v34
  %v269 = vunpack.c.l.b16 %v35
  %v270 = vunpack.c.l.b16 %v36
  %v271 = vunpack.c.l.b16 %v37
  %v272 = vunpack.c.l.b16 %v38
  %v273 = vunpack.c.l.b16 %v39
  %v274 = vunpack.c.l.b16 %v40
  %v275 = vunpack.c.l.b16 %v41
  %v276 = vunpack.c.l.b16 %v42
  %v277 = vunpack.c.l.b16 %v43
  %v278 = vunpack.c.l.b16 %v44
  %v279 = vunpack.c.l.b16 %v45
  %v280 = vunpack.c.l.b16 %v46
  %v281 = vunpack.c.l.b16 %v47
  %v282 = vunpack.c.l.b16 %v48
  %v283 = vunpack.c.l.b16 %v49
  %v284 = vunpack.c.l.b16 %v50
  %v285 = vunpack.c.l.b16 %v51
  %v286 = vunpack.c.l.b16 %v52
  %v287 = vunpack.c.l.b16 %v53
  %v288 = vunpack.c.l.b16 %v54
  %v289 = vunpack.c.l.b16 %v55
  %v290 = vunpack.c.l.b16 %v56
  %v291 = vunpack.c.l.b16 %v57
  %v292 = vunpack.c.l.b16 %v58
  %v293 = vunpack.c.l.b16 %v59
  %v294 = vunpack.c.l.b16 %v60
  %v295 = vunpack.c.l.b16 %v61
  %v296 = vunpack.c.l.b16 %v62
  %v297 = vunpack.c.l.b16 %v63
  %v298 = vunpack.c.l.b16 %v64
  %v299 = vunpack.c.l.b16 %v65
  %v300 = vunpack.c.l.b16 %v66
  %v301 = vunpack.c.l.b16 %v67
  %v302 = vunpack.c.l.b16 %v68
  %v303 = vunpack.c.l.b16 %v69
  %v304 = vunpack.c.l.b16 %v70
  %v305 = vunpack.c.l.b16 %v71
  %v306 = vunpack.c.l.b16 %v72
  %v307 = vunpack.c.l.b16 %v73
  %v308 = vunpack.c.l.b16 %v74
  %v309 = vunpack.c.l.b16 %v75
  %v310 = vunpack.c.l.b16 %v76
  %v311 = vunpack.c.l.b16 %v77
  %v312 = vunpack.c.l.b16 %v78
  %v313 = vunpack.c.l.b16 %v79
  %v314 = vunpack.c.l.b16 %v80
  %v315 = vunpack.c.l.b16 %v81
  %v316 = vunpack.c.l.b16 %v82
  %v317 = vunpack.c.l.b16 %v83
  %v318 = vunpack.c.l.b16 %v84
  %v319 = vunpack.c.l.b16 %v85
  %v320 = vunpack.c.l.b16 %v86
  %v321 = vunpack.c.l.b16 %v87
  %v322 = vunpack.c.l.b16 %v88
  %v323 = vunpack.c.l.b16 %v89
  %v324 = vunpack.c.l.b16 %v90
  %v325 = vunpack.c.l.b16 %v91
  %v326 = vunpack.c.l.b16 %v92
  %v327 = vunpack.c.l.b16 %v93
  %v328 = vunpack.c.l.b16 %v94
  %v329 = vunpack.c.l.b16 %v95
  %v330 = vunpack.c.l.b16 %v96
  %v331 = vunpack.c.l.b16 %v97
  %v332 = vunpack.c.l.b16 %v98
  %v333 = vunpack.c.l.b16 %v99
  %v334 = vunpack.c.l.b16 %v100
  %v335 = vunpack.c.l.b16 %v101
  %v336 = vunpack.c.l.b16 %v102
  %v337 = vunpack.c.l.b16 %v103
  %v338 = vunpack.c.l.b16 %v104
  %v339 = vunpack.c.l.b16 %v105
  %v340 = vunpack.c.l.b16 %v106
  %v341 = vunpack.c.l.b16 %v107
  %v342 = vunpack.c.l.b16 %v108
  %v343 = vunpack.c.l.b16 %v109
  %v344 = vunpack.c.l.b16 %v110
  %v345 = vunpack.c.l.b16 %v111
  %v346 = vunpack.c.l.b16 %v112
  %v347 = vunpack.c.l.b16 %v113
  %v348 = vunpack.c.l.b16 %v114
  %v349 = vunpack.c.l.b16 %v115
  %v350 = vunpack.c.l.b16 %v116
  %v351 = vpack.c.b16 %v256, %v255
  %v352 = vpack.c.b16 %v258, %v257
  %v353 = vpack.c.b16 %v260, %v259
  %v354 = vpack.c.b16 %v262, %v261
  %v355 = vpack.c.b16 %v264, %v263
  %v356 = vpack.c.b16 %v266, %v265
  %v357 = vpack.c.b16 %v268, %v267
  %v358 = vpack.c.b16 %v270, %v269
  %v359 = vpack.c.b16 %v272, %v271
  %v360 = vpack.c.b16 %v274, %v273
  %v361 = vpack.c.b16 %v276, %v275
  %v362 = vpack.c.b16 %v278, %v277
  %v363 = vpack.c.b16 %v280, %v279
  %v364 = vpack.c.b16 %v282, %v281
  %v365 = vpack.c.b16 %v284, %v283
  %v366 = vpack.c.b16 %v286, %v285
  %v367 = vpack.c.b16 %v288, %v287
  %v368 = vpack.c.b16 %v290, %v289
  %v369 = vpack.c.b16 %v292, %v291
  %v370 = vpack.c.b16 %v294, %v293
  %v371 = vpack.c.b16 %v296, %v295
  %v372 = vpack.c.b16 %v298, %v297
  %v373 = vpack.c.b16 %v300, %v299
  %v374 = vpack.c.b16 %v302, %v301
  %v375 = vpack.c.b16 %v304, %v303
  %v376 = vpack.c.b16 %v306, %v305
  %v377 = vpack.c.b16 %v308, %v307
  %v378 = vpack.c.b16 %v310, %v309
  %v379 = vpack.c.b16 %v312, %v311
  %v380 = vpack.c.b16 %v314, %v313
  %v381 = vpack.c.b16 %v316, %v315
  %v382 = vpack.c.b16 %v318, %v317
  %v383 = vpack.c.b16 %v320, %v319
  %v384 = vpack.c.b16 %v322, %v321
  %v385 = vpack.c.b16 %v324, %v323
  %v386 = vpack.c.b16 %v326, %v325
  %v387 = vpack.c.b16 %v328, %v327
  %v388 = vpack.c.b16 %v330, %v329
  %v389 = vpack.c.b16 %v332, %v331
  %v390 = vpack.c.b16 %v334, %v333
  %v391 = vpack.c.b16 %v336, %v335
  %v392 = vpack.c.b16 %v338, %v337
  %v393 = vpack.c.b16 %v340, %v339
  %v394 = vpack.c.b16 %v342, %v341
  %v395 = vpack.c.b16 %v344, %v343
  %v396 = vpack.c.b16 %v346, %v345
  %v397 = vpack.c.b16 %v348, %v347
  %v398 = vpack.c.b16 %v350, %v349
  %447 = vmatprep.subr.bf16.mxu0 0
  %448 = vmatpush1.bf16.msra.mxu0 %v351
  %449 = vmatprep.subr.bf16.mxu0 0
  %450 = vmatpush1.bf16.msra.mxu0 %v352
  %451 = vmatprep.subr.bf16.mxu0 0
  %452 = vmatpush1.bf16.msra.mxu0 %v353
  %453 = vmatprep.subr.bf16.mxu0 0
  %454 = vmatpush1.bf16.msra.mxu0 %v354
  %455 = vmatprep.subr.bf16.mxu0 0
  %456 = vmatpush1.bf16.msra.mxu0 %v355
  %457 = vmatprep.subr.bf16.mxu0 0
  %458 = vmatpush1.bf16.msra.mxu0 %v356
  %459 = vmatprep.subr.bf16.mxu0 0
  %460 = vmatpush1.bf16.msra.mxu0 %v357
  %461 = vmatprep.subr.bf16.mxu0 0
  %462 = vmatpush1.bf16.msra.mxu0 %v358
  %463 = vmatprep.subr.bf16.mxu0 0
  %464 = vmatpush1.bf16.msra.mxu0 %v359
  %465 = vmatprep.subr.bf16.mxu0 0
  %466 = vmatpush1.bf16.msra.mxu0 %v360
  %467 = vmatprep.subr.bf16.mxu0 0
  %468 = vmatpush1.bf16.msra.mxu0 %v361
  %469 = vmatprep.subr.bf16.mxu0 0
  %470 = vmatpush1.bf16.msra.mxu0 %v362
  %471 = vmatprep.subr.bf16.mxu0 0
  %472 = vmatpush1.bf16.msra.mxu0 %v363
  %473 = vmatprep.subr.bf16.mxu0 0
  %474 = vmatpush1.bf16.msra.mxu0 %v364
  %475 = vmatprep.subr.bf16.mxu0 0
  %476 = vmatpush1.bf16.msra.mxu0 %v365
  %477 = vmatprep.subr.bf16.mxu0 0
  %478 = vmatpush1.bf16.msra.mxu0 %v366
  %479 = vmatprep.mubr.bf16.mxu0 %v148
  %480 = vmatmul.mubr.bf16.gmra.mrb[0].mxu0 %v147
  %v481 = vpop.f32.mrb[0].mxu0
  %v482 = vadd.f32 %v122, %v481
  %v483 = vpop.f32.mrb[0].mxu0
  %v484 = vpop.f32.mrb[0].mxu0
  %v485 = vadd.f32 %v127, %v484
  %v486 = vpop.f32.mrb[0].mxu0
  %487 = vdwg.mxu0
  %488 = vmatprep.subr.bf16.mxu0 0
  %489 = vmatpush1.bf16.msra.mxu0 %v367
  %490 = vmatprep.subr.bf16.mxu0 0
  %491 = vmatpush1.bf16.msra.mxu0 %v368
  %492 = vmatprep.subr.bf16.mxu0 0
  %493 = vmatpush1.bf16.msra.mxu0 %v369
  %494 = vmatprep.subr.bf16.mxu0 0
  %495 = vmatpush1.bf16.msra.mxu0 %v370
  %496 = vmatprep.subr.bf16.mxu0 0
  %497 = vmatpush1.bf16.msra.mxu0 %v371
  %498 = vmatprep.subr.bf16.mxu0 0
  %499 = vmatpush1.bf16.msra.mxu0 %v372
  %500 = vmatprep.subr.bf16.mxu0 0
  %501 = vmatpush1.bf16.msra.mxu0 %v373
  %502 = vmatprep.subr.bf16.mxu0 0
  %503 = vmatpush1.bf16.msra.mxu0 %v374
  %504 = vmatprep.subr.bf16.mxu0 0
  %505 = vmatpush1.bf16.msra.mxu0 %v375
  %506 = vmatprep.subr.bf16.mxu0 0
  %507 = vmatpush1.bf16.msra.mxu0 %v376
  %508 = vmatprep.subr.bf16.mxu0 0
  %509 = vmatpush1.bf16.msra.mxu0 %v377
  %510 = vmatprep.subr.bf16.mxu0 0
  %511 = vmatpush1.bf16.msra.mxu0 %v378
  %512 = vmatprep.subr.bf16.mxu0 0
  %513 = vmatpush1.bf16.msra.mxu0 %v379
  %514 = vmatprep.subr.bf16.mxu0 0
  %515 = vmatpush1.bf16.msra.mxu0 %v380
  %516 = vmatprep.subr.bf16.mxu0 0
  %517 = vmatpush1.bf16.msra.mxu0 %v381
  %518 = vmatprep.subr.bf16.mxu0 0
  %519 = vmatpush1.bf16.msra.mxu0 %v382
  %520 = vmatprep.mubr.bf16.mxu0 %v150
  %521 = vmatmul.mubr.bf16.gmra.mrb[0].mxu0 %v149
  %v522 = vpop.f32.mrb[0].mxu0
  %v523 = vadd.f32 %v482, %v522
  %v524 = vpop.f32.mrb[0].mxu0
  %v525 = vpop.f32.mrb[0].mxu0
  %v526 = vadd.f32 %v485, %v525
  %v527 = vpop.f32.mrb[0].mxu0
  %528 = vdwg.mxu0
  %529 = vmatprep.subr.bf16.mxu0 0
  %530 = vmatpush1.bf16.msra.mxu0 %v383
  %531 = vmatprep.subr.bf16.mxu0 0
  %532 = vmatpush1.bf16.msra.mxu0 %v384
  %533 = vmatprep.subr.bf16.mxu0 0
  %534 = vmatpush1.bf16.msra.mxu0 %v385
  %535 = vmatprep.subr.bf16.mxu0 0
  %536 = vmatpush1.bf16.msra.mxu0 %v386
  %537 = vmatprep.subr.bf16.mxu0 0
  %538 = vmatpush1.bf16.msra.mxu0 %v387
  %539 = vmatprep.subr.bf16.mxu0 0
  %540 = vmatpush1.bf16.msra.mxu0 %v388
  %541 = vmatprep.subr.bf16.mxu0 0
  %542 = vmatpush1.bf16.msra.mxu0 %v389
  %543 = vmatprep.subr.bf16.mxu0 0
  %544 = vmatpush1.bf16.msra.mxu0 %v390
  %545 = vmatprep.subr.bf16.mxu0 0
  %546 = vmatpush1.bf16.msra.mxu0 %v391
  %547 = vmatprep.subr.bf16.mxu0 0
  %548 = vmatpush1.bf16.msra.mxu0 %v392
  %549 = vmatprep.subr.bf16.mxu0 0
  %550 = vmatpush1.bf16.msra.mxu0 %v393
  %551 = vmatprep.subr.bf16.mxu0 0
  %552 = vmatpush1.bf16.msra.mxu0 %v394
  %553 = vmatprep.subr.bf16.mxu0 0
  %554 = vmatpush1.bf16.msra.mxu0 %v395
  %555 = vmatprep.subr.bf16.mxu0 0
  %556 = vmatpush1.bf16.msra.mxu0 %v396
  %557 = vmatprep.subr.bf16.mxu0 0
  %558 = vmatpush1.bf16.msra.mxu0 %v397
  %559 = vmatprep.subr.bf16.mxu0 0
  %560 = vmatpush1.bf16.msra.mxu0 %v398
  %561 = vmatprep.mubr.bf16.mxu0 %v152
  %562 = vmatmul.mubr.bf16.gmra.mrb[0].mxu0 %v151
  %v563 = vpop.f32.mrb[0].mxu0
  %v564 = vadd.f32 %v523, %v563
  %v565 = vpop.f32.mrb[0].mxu0
  %v566 = vpop.f32.mrb[0].mxu0
  %v567 = vadd.f32 %v526, %v566
  %v568 = vpop.f32.mrb[0].mxu0
  %569 = vdwg.mxu0
  %570 = vst [vmem:[%s3] sm:$0xff] %v564
  %571 = vst [vmem:[%s3 + $0x8] sm:$0xff] %v567
  // Predicated region
  $region14: #{_midrep_forward.1} parent=0 // pred_check
    _
  $region15: #{_midrep_forward.1} parent=0 // pred_check_branch
    %573 = sbr.rel (0) target = $region17
  $region16: #{_midrep_forward.1} parent=0 // pred_region
    _
  $region17: #{_midrep_forward.1} parent=0 // pred_fallthru
    _
  // Predicated region
  $region18: #{_midrep_forward.1} parent=0 // pred_check
    _
  $region19: #{_midrep_forward.1} parent=0 // pred_check_branch
    %575 = sbr.rel (0) target = $region21
  $region20: #{_midrep_forward.1} parent=0 // pred_region
    _
  $region21: #{_midrep_forward.1} parent=0 // pred_fallthru
    _

</llo_original>
